<compile_context>
chip_gen: v7x
topology: tpu7x:2x2x1
jax: 0.10.0
libtpu: 0.0.40
codegen_flags: <defaults>
</compile_context>

<pallas_src>
import functools

import jax
import jax.numpy as jnp
from jax import lax
from jax.experimental import pallas as pl
from jax.experimental.pallas import tpu as pltpu

MASK = -1.0            # masked_fill value from the PyTorch module
NEG_FILL = -3.0e38     # "drop this padded row" sentinel (never wins the max)


def _round_up(x, m):
    return (x + m - 1) // m * m


def _cdiv(a, b):
    return -(-a // b)


def _vha_kernel(img_ref, fill_ref, caps_ref, wmask_ref, out_ref, *, r_pad):
    """One grid step: B_IMG images x one caption-lane tile.

    img_ref:   (1, B_IMG*R_pad, D_pad)   VMEM  batched image regions (LHS, bf16)
    fill_ref:  (1, B_IMG*R_pad, 1)       VMEM  0.0 = valid row, else fill value
    caps_ref:  (D_pad, TILE_CW)          VMEM  pre-transposed caption words (RHS)
    wmask_ref: (1, TILE_CW)              VMEM  1.0 where the caption word is valid
    out_ref:   (1, B_IMG, TILE_CW)       VMEM
    """
    lhs = img_ref[0]                        # (BR, D)
    rhs = caps_ref[...]                     # (D, TILE_CW)

    # MXU: standard (M,K)x(K,N) contraction, f32 accumulation.
    sims = jnp.dot(lhs, rhs, preferred_element_type=jnp.float32)  # (BR, TILE_CW)

    # Row mask / fill: 0.0 -> keep sims, -1 -> masked region, -3e38 -> pad row.
    fill = fill_ref[0]                      # (BR, 1)
    sims = jnp.where(fill == 0.0, sims, fill)

    # Segmented max over regions: (BR, CW) -> (B_IMG, R_pad, CW), reduce axis=1.
    # R_pad is a multiple of 8 so this reshape only splits the sublane-major dim
    # (no relayout across (8,128) tiles).
    b_img = out_ref.shape[1]
    sims = sims.reshape(b_img, r_pad, sims.shape[-1])
    res = jnp.max(sims, axis=1)             # (B_IMG, TILE_CW)

    # Word-validity mask (image independent), applied on the small result tile.
    res = jnp.where(wmask_ref[...] > 0.0, res, jnp.float32(MASK))
    out_ref[0] = res


def vha_coding(imgs, caps, img_lens, cap_lens, *,
               compute_dtype=jnp.bfloat16, max_tile_cw=512, target_rows=512):
    img_lens = img_lens.astype(jnp.int32)
    cap_lens = cap_lens.astype(jnp.int32)

    # NOTE: int(...) forces a device->host sync and a fresh compile per distinct
    # (r_pad, cw_pad) geometry; lens are bucketed (8-multiples) below so repeated
    # calls with similar lengths reuse the same compiled kernel.
    max_r = int(img_lens.max())
    max_w = int(cap_lens.max())
    n_img, _, d = imgs.shape
    n_cap = caps.shape[0]

    # ---------------- padded / tiled geometry ----------------
    d_pad = _round_up(d, 128)                    # MXU K dim, lane aligned
    r_pad = _round_up(max_r, 8)                  # sublane alignment (bucketed)
    w_stride = _round_up(max_w, 8)               # per-caption word stride (bucketed)

    cw = n_cap * w_stride                        # flattened caption-word axis
    cw_128 = _round_up(cw, 128)
    n_cw_tiles = max(1, _cdiv(cw_128, max_tile_cw))
    tile_cw = _round_up(_cdiv(cw_128, n_cw_tiles), 128)   # <128 wasted lanes total
    cw_pad = tile_cw * n_cw_tiles

    # Image batching: fill the MXU M dim, rebalance to minimize padded images.
    b_ideal = max(1, min(target_rows // r_pad, n_img))
    n_img_blocks = _cdiv(n_img, b_ideal)
    b_img = _cdiv(n_img, n_img_blocks)
    if n_cw_tiles == 1 and n_img_blocks == 1 and n_img > 1:
        # Keep >=2 steps on a parallel axis so dual-TC chips (v7x) stay busy.
        n_img_blocks = 2
        b_img = _cdiv(n_img, 2)
    n_img_pad = n_img_blocks * b_img
    br = b_img * r_pad

    # ---------------- host-side prep: slice, pad, flatten, transpose ----------------
    imgs_s = imgs[:, :max_r, :].astype(compute_dtype)
    imgs_p = jnp.pad(
        imgs_s, ((0, n_img_pad - n_img), (0, r_pad - max_r), (0, d_pad - d)))
    imgs_flat = imgs_p.reshape(n_img_blocks, br, d_pad)

    caps_s = caps[:, :max_w, :].astype(compute_dtype)
    caps_s = jnp.pad(caps_s, ((0, 0), (0, w_stride - max_w), (0, d_pad - d)))
    caps_flat = jnp.pad(caps_s.reshape(cw, d_pad), ((0, cw_pad - cw), (0, 0)))
    caps_t = caps_flat.T                         # (d_pad, cw_pad): (K, N) form

    # Row "fill" column: 0 = valid, MASK = masked region, NEG_FILL = padded row.
    img_lens_p = jnp.pad(img_lens, (0, n_img_pad - n_img))          # pad with 0
    r_idx = jnp.arange(r_pad, dtype=jnp.int32)[None, :]
    row_valid = r_idx < img_lens_p[:, None]                          # (n_img_pad, r_pad)
    pad_row = r_idx >= max_r                                         # (1, r_pad)
    fill = jnp.where(row_valid, 0.0,
                     jnp.where(pad_row, NEG_FILL, float(MASK)))
    fill_col = fill.astype(jnp.float32).reshape(n_img_blocks, br, 1)

    # Word-validity mask on the flattened (padded) caption axis.
    w_idx = jnp.arange(w_stride, dtype=jnp.int32)[None, :]
    word_valid = (w_idx < cap_lens[:, None]).astype(jnp.float32).reshape(1, cw)
    word_valid = jnp.pad(word_valid, ((0, 0), (0, cw_pad - cw)))

    # ---------------- grid-axis order: minimize HBM re-streaming ----------------
    in_itemsize = jnp.dtype(compute_dtype).itemsize
    imgs_bytes = n_img_blocks * br * d_pad * in_itemsize
    caps_bytes = cw_pad * d_pad * in_itemsize
    caps_inner = (imgs_bytes + n_img_blocks * caps_bytes
                  <= caps_bytes + n_cw_tiles * imgs_bytes)
    if caps_inner:
        grid = (n_img_blocks, n_cw_tiles)
        img_map = lambda ib, jc: (ib, 0, 0)
        fill_map = lambda ib, jc: (ib, 0, 0)
        caps_map = lambda ib, jc: (0, jc)
        wm_map = lambda ib, jc: (0, jc)
        out_map = lambda ib, jc: (ib, 0, jc)
    else:
        grid = (n_cw_tiles, n_img_blocks)
        img_map = lambda jc, ib: (ib, 0, 0)
        fill_map = lambda jc, ib: (ib, 0, 0)
        caps_map = lambda jc, ib: (0, jc)
        wm_map = lambda jc, ib: (0, jc)
        out_map = lambda jc, ib: (ib, 0, jc)

    # ---------------- VMEM budget (v7x: 64 MiB physical / 32 MiB default scoped) ----
    vmem_need = 2 * (br * d_pad * in_itemsize              # imgs block (double-buffered)
                     + d_pad * tile_cw * in_itemsize       # caps block
                     + br * 128 * 4                        # fill column (lane-padded)
                     + 8 * tile_cw * 4                     # word mask (sublane-padded)
                     + _round_up(b_img, 8) * tile_cw * 4)  # output block
    vmem_limit = int(min(max(2 * vmem_need, 32 << 20), 64 << 20))

    kernel = functools.partial(_vha_kernel, r_pad=r_pad)

    out = pl.pallas_call(
        kernel,
        out_shape=jax.ShapeDtypeStruct((n_img_blocks, b_img, cw_pad), jnp.float32),
        grid_spec=pltpu.PrefetchScalarGridSpec(
            num_scalar_prefetch=0,
            grid=grid,
            in_specs=[
                pl.BlockSpec((1, br, d_pad), img_map),
                pl.BlockSpec((1, br, 1), fill_map),
                pl.BlockSpec((d_pad, tile_cw), caps_map),
                pl.BlockSpec((1, tile_cw), wm_map),
            ],
            out_specs=pl.BlockSpec((1, b_img, tile_cw), out_map),
        ),
        compiler_params=pltpu.CompilerParams(
            dimension_semantics=("parallel", "parallel"),
            vmem_limit_bytes=vmem_limit),
    )(imgs_flat, fill_col, caps_t, word_valid)

    # ---------------- epilogue: drop padding only (masks already applied) ----------
    out = out.reshape(n_img_pad, cw_pad)[:n_img, :cw]
    out = out.reshape(n_img, n_cap, w_stride)[:, :, :max_w]
    return out


def vha_reference(imgs, caps, img_lens, cap_lens):
    """Pure-JAX reference mirroring the PyTorch module."""
    max_r = int(img_lens.max())
    max_w = int(cap_lens.max())
    sims = jnp.einsum('ird,cwd->icrw', imgs, caps,
                      precision=lax.Precision.HIGHEST)[:, :, :max_r, :max_w]
    mask_i = jnp.arange(max_r)[None, :] < img_lens[:, None]   # (n_img, R)
    mask_c = jnp.arange(max_w)[None, :] < cap_lens[:, None]   # (n_cap, W)
    mask = mask_i[:, None, :, None] & mask_c[None, :, None, :]
    sims = jnp.where(mask, sims, MASK)
    return sims.max(axis=-2)


if __name__ == "__main__":
    key = jax.random.PRNGKey(0)
    k_img, k_cap = jax.random.split(key)

    n_img, n_regions, d = 2, 16, 32
    n_cap, n_words = 3, 8

    imgs = jax.random.normal(k_img, (n_img, n_regions, d), dtype=jnp.float32)
    caps = jax.random.normal(k_cap, (n_cap, n_words, d), dtype=jnp.float32)
    img_lens = jnp.array([16, 11], dtype=jnp.int32)
    cap_lens = jnp.array([8, 5, 7], dtype=jnp.int32)

    # Default bf16 compute path: compare against a reference on bf16-rounded inputs.
    out_bf16 = vha_coding(imgs, caps, img_lens, cap_lens)
    out_bf16 = jax.block_until_ready(out_bf16)
    imgs_r = imgs.astype(jnp.bfloat16).astype(jnp.float32)
    caps_r = caps.astype(jnp.bfloat16).astype(jnp.float32)
    ref_bf16 = vha_reference(imgs_r, caps_r, img_lens, cap_lens)
    assert out_bf16.shape == ref_bf16.shape, (out_bf16.shape, ref_bf16.shape)
    assert jnp.allclose(out_bf16, ref_bf16, atol=1e-3, rtol=1e-3), \
        "bf16 path mismatch vs reference"

    # Exact f32 compute path (same kernel, compute_dtype=f32).
    out_f32 = vha_coding(imgs, caps, img_lens, cap_lens,
                         compute_dtype=jnp.float32)
    out_f32 = jax.block_until_ready(out_f32)
    ref_f32 = vha_reference(imgs, caps, img_lens, cap_lens)
    assert jnp.allclose(out_f32, ref_f32, atol=1e-5, rtol=1e-5), \
        "f32 path mismatch vs reference"

    print("KERNEL_OK")
</pallas_src>

<mosaic_0001>
module attributes {stable_mosaic.version = 11 : i64} {
  func.func @_vha_kernel(%arg0: i32, %arg1: i32, %arg2: memref<1x16x128xbf16, #tpu.memory_space<vmem>>, %arg3: memref<1x16x1xf32, #tpu.memory_space<vmem>>, %arg4: memref<128x128xbf16, #tpu.memory_space<vmem>>, %arg5: memref<1x128xf32, #tpu.memory_space<vmem>>, %arg6: memref<1x1x128xf32, #tpu.memory_space<vmem>>) attributes {dimension_semantics = [#tpu.dimension_semantics<parallel>, #tpu.dimension_semantics<parallel>], iteration_bounds = array<i64: 1, 2>, scalar_prefetch = 0 : i64, scratch_operands = 0 : i64, tpu.core_type = #tpu.core_type<tc>, window_params = [{transform_indices = @transform_0, window_bounds = array<i64: 1, 16, 128>}, {transform_indices = @transform_1, window_bounds = array<i64: 1, 16, 1>}, {transform_indices = @transform_2, window_bounds = array<i64: 128, 128>}, {transform_indices = @transform_3, window_bounds = array<i64: 1, 128>}, {transform_indices = @transform_4, window_bounds = array<i64: 1, 1, 128>}]} {
    %c0 = arith.constant 0 : index
    %c0_0 = arith.constant 0 : index
    %c0_1 = arith.constant 0 : index
    %0 = vector.load %arg2[%c0, %c0_0, %c0_1] : memref<1x16x128xbf16, #tpu.memory_space<vmem>>, vector<1x16x128xbf16>
    %1 = vector.shape_cast %0 : vector<1x16x128xbf16> to vector<16x128xbf16>
    %c0_2 = arith.constant 0 : index
    %c0_3 = arith.constant 0 : index
    %2 = vector.load %arg4[%c0_2, %c0_3] : memref<128x128xbf16, #tpu.memory_space<vmem>>, vector<128x128xbf16>
    %cst = arith.constant dense<0.000000e+00> : vector<16x128xf32>
    %3 = tpu.matmul %1, %2, %cst {dimension_numbers = #tpu.dot_dimension_numbers<[1], [0], [0], [1], [0, 0, 1, 1], [], []>} : vector<16x128xbf16>, vector<128x128xbf16>, vector<16x128xf32> -> vector<16x128xf32>
    %c0_4 = arith.constant 0 : index
    %c0_5 = arith.constant 0 : index
    %c0_6 = arith.constant 0 : index
    %4 = vector.load %arg3[%c0_4, %c0_5, %c0_6] : memref<1x16x1xf32, #tpu.memory_space<vmem>>, vector<1x16x1xf32>
    %5 = vector.shape_cast %4 : vector<1x16x1xf32> to vector<16x1xf32>
    %cst_7 = arith.constant 0.000000e+00 : f32
    %6 = vector.broadcast %cst_7 : f32 to vector<16x1xf32>
    %7 = arith.cmpf oeq, %5, %6 : vector<16x1xf32>
    %8 = vector.shape_cast %7 : vector<16x1xi1> to vector<16x1xi1>
    %9 = vector.broadcast %8 : vector<16x1xi1> to vector<16x128xi1>
    %10 = vector.shape_cast %5 : vector<16x1xf32> to vector<16x1xf32>
    %11 = vector.broadcast %10 : vector<16x1xf32> to vector<16x128xf32>
    %12 = arith.select %9, %3, %11 : vector<16x128xi1>, vector<16x128xf32>
    %13 = vector.shape_cast %12 : vector<16x128xf32> to vector<1x16x128xf32>
    %cst_8 = arith.constant dense<0xFF800000> : vector<1x128xf32>
    %14 = vector.multi_reduction <maximumf>, %13, %cst_8 [1] : vector<1x16x128xf32> to vector<1x128xf32>
    %c0_9 = arith.constant 0 : index
    %c0_10 = arith.constant 0 : index
    %15 = vector.load %arg5[%c0_9, %c0_10] : memref<1x128xf32, #tpu.memory_space<vmem>>, vector<1x128xf32>
    %cst_11 = arith.constant 0.000000e+00 : f32
    %16 = vector.broadcast %cst_11 : f32 to vector<1x128xf32>
    %17 = arith.cmpf ogt, %15, %16 : vector<1x128xf32>
    %cst_12 = arith.constant -1.000000e+00 : f32
    %18 = vector.broadcast %cst_12 : f32 to vector<1x128xf32>
    %19 = arith.select %17, %14, %18 : vector<1x128xi1>, vector<1x128xf32>
    %c0_13 = arith.constant 0 : index
    %c0_14 = arith.constant 0 : index
    %c0_15 = arith.constant 0 : index
    %20 = vector.load %arg6[%c0_13, %c0_14, %c0_15] : memref<1x1x128xf32, #tpu.memory_space<vmem>>, vector<1x1x128xf32>
    %21 = vector.shape_cast %20 : vector<1x1x128xf32> to vector<1x128xf32>
    %22 = vector.shape_cast %19 : vector<1x128xf32> to vector<1x1x128xf32>
    tpu.vector_store %arg6[%c0_13, %c0_14, %c0_15], %22 {strides = array<i32>} : memref<1x1x128xf32, #tpu.memory_space<vmem>>, vector<1x1x128xf32>,
    return
  }
  func.func @transform_0(%arg0: i32, %arg1: i32) -> (i32, i32, i32) {
    %c0_i32 = arith.constant 0 : i32
    %c0_i32_0 = arith.constant 0 : i32
    %c0_i32_1 = arith.constant 0 : i32
    return %arg1, %c0_i32, %c0_i32_0 : i32, i32, i32
  }
  func.func @transform_1(%arg0: i32, %arg1: i32) -> (i32, i32, i32) {
    %c0_i32 = arith.constant 0 : i32
    %c0_i32_0 = arith.constant 0 : i32
    %c0_i32_1 = arith.constant 0 : i32
    return %arg1, %c0_i32, %c0_i32_0 : i32, i32, i32
  }
  func.func @transform_2(%arg0: i32, %arg1: i32) -> (i32, i32) {
    %c0_i32 = arith.constant 0 : i32
    %c0_i32_0 = arith.constant 0 : i32
    return %c0_i32, %arg0 : i32, i32
  }
  func.func @transform_3(%arg0: i32, %arg1: i32) -> (i32, i32) {
    %c0_i32 = arith.constant 0 : i32
    %c0_i32_0 = arith.constant 0 : i32
    return %c0_i32, %arg0 : i32, i32
  }
  func.func @transform_4(%arg0: i32, %arg1: i32) -> (i32, i32, i32) {
    %c0_i32 = arith.constant 0 : i32
    %c0_i32_0 = arith.constant 0 : i32
    return %arg1, %c0_i32, %arg0 : i32, i32, i32
  }
}

</mosaic_0001>

<llo_original>
// kernel: tpu_custom_call.1
$region0: #{tpu_custom_call.1}
  #allocation0 [shape = 'u32[]', space=smem, size = 0x4, offset = 0x4, fixed_abs, tag = 'smem constant byte address 0x4 - core index']
  #allocation1 [shape = 'u32[144,128]{1,0:T(1,128)}', space=vmem, size = 0x12000, scoped, tag = 'internal scratch']
  %s0 = inlined_call_operand.vmem [shape: bf16[2,16,128], index: 0, kind: input, shape index: {}]
  %s1 = inlined_call_operand.vmem [shape: f32[2,16,1], index: 1, kind: input, shape index: {}]
  %s2 = inlined_call_operand.hbm [shape: bf16[128,128], index: 2, kind: input, shape index: {}]
  %s3 = inlined_call_operand.vmem [shape: f32[1,128], index: 3, kind: input, shape index: {}]
  %s4 = inlined_call_operand.hbm [shape: f32[2,1,128], index: 4, kind: output, shape index: {}]
  %s5 = sld [smem:[#allocation0]]
  $region53: #{tpu_custom_call.1} parent=0
    _
  %s7 = ssub.s32 1, %s5
  %s8 = scalar_select 0, %s7, %s5
  $region1: #{tpu_custom_call.1} parent=0
    #allocation2 [shape = 'u8[32768]{0}', space=vmem, size = 0x8000, scoped, tag = 'input window, operand 2, single buffered']
    #allocation3 [shape = 's32[2]{0}', space=sflag, size = 0x8, scoped, tag = 'scoped memory for tpu_custom_call.1']
    #allocation4 [shape = 's32[2]{0}', space=sflag, size = 0x8, scoped, tag = 'scoped memory for tpu_custom_call.1']
    #allocation5 [shape = 'u8[1024]{0}', space=vmem, size = 0x400, scoped, tag = 'output window, operand 0']
    %9 = vsyncpa [#allocation3], 0
    %10 = vsyncpa [#allocation4], 0
    %s11 = scalar_lea.sflag [#allocation4], 1
    %12 = vsyncpa %s11, 0
    loop: start=0, step=1, limit=4
    $region2: #{tpu_custom_call.1} parent=1 // loop_pre_header
      _
    $region3: #{tpu_custom_call.1} parent=1 // loop_header
      %s14 = sphi 0, %s18
      %p15 = scmp.ge.s32.totalorder %s14, 4
      %s21 = sphi 0, %s33
      %s22 = sphi 0, %s29
      %s23 = sphi 0, %s21
      %s24 = sphi 0, %s22
      %s25 = sphi 0, %s23
      %s26 = sphi 0, %s24
      %s36 = sphi 0, %s38
      %s39 = sphi 0, %s36
      %s40 = sphi 0, %s39
      %s56 = sphi 0, %s40
      %s62 = sphi 0, %s64
      %s65 = sphi 0, %s62
      %s66 = sphi 0, %s65
      %s82 = sphi 0, %s66
      %s88 = sphi 0, %s90
      %s91 = sphi 0, %s88
      %s92 = sphi 0, %s91
      %s108 = sphi 0, %s92
      %s114 = sphi 0, %s116
      %s117 = sphi 0, %s114
      %s118 = sphi 0, %s117
      %s134 = sphi 0, %s118
      %s142 = sphi 0, %s144
      %s145 = sphi 0, %s142
      %s146 = sphi 0, %s145
      %s162 = sphi 0, %s146
    $region4: #{tpu_custom_call.1} parent=1 // loop_header_branch
      %17 = sbr.rel (%p15) target = $region8
    $region5: #{tpu_custom_call.1} parent=1 // loop_body
      %s19 = ssub.s32 %s14, 1
      %s20 = ssub.s32 %s14, 2
      %s27 = sadd.s32 1, %s22
      %p28 = scmp.ge.s32.totalorder %s27, 2
      %s29 = scalar_select %p28, 0, %s27
      %s30 = sadd.s32 1, %s21
      %s31 = scalar_select %p28, %s30, %s21
      %p32 = scmp.ge.s32.totalorder %s31, 1
      %s33 = scalar_select %p32, 0, %s31
      %s34 = ssub.s32 %s22, %s29
      %p35 = scmp.eq.s32.totalorder %s34, 0
      %s37 = sadd.s32 %s36, 1
      %s38 = scalar_select %p35, %s36, %s37
      %p41 = pneg %p35
      %p42 = scmp.eq.s32.totalorder %s14, 1
      %p43 = por %p41, %p42
      %p44 = scmp.ne.s32.totalorder %s36, %s39
      %p45 = scmp.eq.s32.totalorder %s14, 0
      %p46 = por %p44, %p45
      %p47 = scmp.ne.s32.totalorder %s36, %s39
      %p48 = scmp.eq.s32.totalorder %s19, 1
      %p49 = por %p47, %p48
      %p50 = scmp.ne.s32.totalorder %s39, %s40
      %p51 = scmp.eq.s32.totalorder %s19, 0
      %p52 = por %p50, %p51
      %p53 = scmp.ne.s32.totalorder %s39, %s40
      %p54 = scmp.eq.s32.totalorder %s20, 1
      %p55 = por %p53, %p54
      %p57 = scmp.ne.s32.totalorder %s40, %s56
      %p58 = scmp.eq.s32.totalorder %s20, 0
      %p59 = por %p57, %p58
      %s60 = ssub.s32 %s22, %s29
      %p61 = scmp.eq.s32.totalorder %s60, 0
      %s63 = sadd.s32 %s62, 1
      %s64 = scalar_select %p61, %s62, %s63
      %p67 = pneg %p61
      %p68 = scmp.eq.s32.totalorder %s14, 1
      %p69 = por %p67, %p68
      %p70 = scmp.ne.s32.totalorder %s62, %s65
      %p71 = scmp.eq.s32.totalorder %s14, 0
      %p72 = por %p70, %p71
      %p73 = scmp.ne.s32.totalorder %s62, %s65
      %p74 = scmp.eq.s32.totalorder %s19, 1
      %p75 = por %p73, %p74
      %p76 = scmp.ne.s32.totalorder %s65, %s66
      %p77 = scmp.eq.s32.totalorder %s19, 0
      %p78 = por %p76, %p77
      %p79 = scmp.ne.s32.totalorder %s65, %s66
      %p80 = scmp.eq.s32.totalorder %s20, 1
      %p81 = por %p79, %p80
      %p83 = scmp.ne.s32.totalorder %s66, %s82
      %p84 = scmp.eq.s32.totalorder %s20, 0
      %p85 = por %p83, %p84
      %s86 = ssub.s32 %s21, %s33
      %p87 = scmp.eq.s32.totalorder %s86, 0
      %s89 = sadd.s32 %s88, 1
      %s90 = scalar_select %p87, %s88, %s89
      %p93 = pneg %p87
      %p94 = scmp.eq.s32.totalorder %s14, 1
      %p95 = por %p93, %p94
      %p96 = scmp.ne.s32.totalorder %s88, %s91
      %p97 = scmp.eq.s32.totalorder %s14, 0
      %p98 = por %p96, %p97
      %p99 = scmp.ne.s32.totalorder %s88, %s91
      %p100 = scmp.eq.s32.totalorder %s19, 1
      %p101 = por %p99, %p100
      %p102 = scmp.ne.s32.totalorder %s91, %s92
      %p103 = scmp.eq.s32.totalorder %s19, 0
      %p104 = por %p102, %p103
      %p105 = scmp.ne.s32.totalorder %s91, %s92
      %p106 = scmp.eq.s32.totalorder %s20, 1
      %p107 = por %p105, %p106
      %p109 = scmp.ne.s32.totalorder %s92, %s108
      %p110 = scmp.eq.s32.totalorder %s20, 0
      %p111 = por %p109, %p110
      %s112 = ssub.s32 %s21, %s33
      %p113 = scmp.eq.s32.totalorder %s112, 0
      %s115 = sadd.s32 %s114, 1
      %s116 = scalar_select %p113, %s114, %s115
      %p119 = pneg %p113
      %p120 = scmp.eq.s32.totalorder %s14, 1
      %p121 = por %p119, %p120
      %p122 = scmp.ne.s32.totalorder %s114, %s117
      %p123 = scmp.eq.s32.totalorder %s14, 0
      %p124 = por %p122, %p123
      %p125 = scmp.ne.s32.totalorder %s114, %s117
      %p126 = scmp.eq.s32.totalorder %s19, 1
      %p127 = por %p125, %p126
      %p128 = scmp.ne.s32.totalorder %s117, %s118
      %p129 = scmp.eq.s32.totalorder %s19, 0
      %p130 = por %p128, %p129
      %p131 = scmp.ne.s32.totalorder %s117, %s118
      %p132 = scmp.eq.s32.totalorder %s20, 1
      %p133 = por %p131, %p132
      %p135 = scmp.ne.s32.totalorder %s118, %s134
      %p136 = scmp.eq.s32.totalorder %s20, 0
      %p137 = por %p135, %p136
      %s138 = ssub.s32 %s22, %s29
      %s139 = ssub.s32 %s21, %s33
      %s140 = sor.u32 %s138, %s139
      %p141 = scmp.eq.s32.totalorder %s140, 0
      %s143 = sadd.s32 %s142, 1
      %s144 = scalar_select %p141, %s142, %s143
      %p147 = pneg %p141
      %p148 = scmp.eq.s32.totalorder %s14, 1
      %p149 = por %p147, %p148
      %p150 = scmp.ne.s32.totalorder %s142, %s145
      %p151 = scmp.eq.s32.totalorder %s14, 0
      %p152 = por %p150, %p151
      %p153 = scmp.ne.s32.totalorder %s142, %s145
      %p154 = scmp.eq.s32.totalorder %s19, 1
      %p155 = por %p153, %p154
      %p156 = scmp.ne.s32.totalorder %s145, %s146
      %p157 = scmp.eq.s32.totalorder %s19, 0
      %p158 = por %p156, %p157
      %p159 = scmp.ne.s32.totalorder %s145, %s146
      %p160 = scmp.eq.s32.totalorder %s20, 1
      %p161 = por %p159, %p160
      %p163 = scmp.ne.s32.totalorder %s146, %s162
      %p164 = scmp.eq.s32.totalorder %s20, 0
      %p165 = por %p163, %p164
      %p166 = scmp.le.s32.totalorder 1, %s14
      %p167 = scmp.lt.s32.totalorder %s14, 3
      %p168 = pnand %p166, %p167
      %p169 = pneg %p168
      // Predicated region
      $region9: #{tpu_custom_call.1} parent=5 // pred_check
        _
      $region10: #{tpu_custom_call.1} parent=5 // pred_check_branch
        %171 = sbr.rel (%p168) target = $region12
      $region11: #{tpu_custom_call.1} parent=5 // pred_region
        %s172 = ssub.s32 %s14, 1
        // Predicated region
        $region13: #{tpu_custom_call.1} parent=11 // pred_check
          %p173 = pneg %p104
        $region14: #{tpu_custom_call.1} parent=11 // pred_check_branch
          %175 = sbr.rel (%p173) target = $region16
        $region15: #{tpu_custom_call.1} parent=11 // pred_region
          %s177 = ssub.s32 1024, 1024
          %178 = vsyncadd [#allocation3], %s177
          %s179 = smul.addr %s23, 64
          %s180 = scalar_lea.hbm %s2, %s179
          %s181 = sshll.u32 [#allocation2], 4
          %s182 = int_to_ptr.vmem [resolvable:$true] %s181
          %187 = dma.hbm_to_vmem [thread:$0]  %s180, 1024, %s182, [#allocation3], 64, 64, 4
        $region16: #{tpu_custom_call.1} parent=11 // pred_fallthru
          _
        // Predicated region
        $region17: #{tpu_custom_call.1} parent=11 // pred_check
          %p188 = pneg %p130
        $region18: #{tpu_custom_call.1} parent=11 // pred_check_branch
          %190 = sbr.rel (%p188) target = $region20
        $region19: #{tpu_custom_call.1} parent=11 // pred_region
          %p191 = scmp.lt.s32.totalorder %s23, 0
          %s192 = scalar_select %p191, %s23, 0
          %s193 = scalar_lea.vmem %s3, %s192
        $region20: #{tpu_custom_call.1} parent=11 // pred_fallthru
          _
      $region12: #{tpu_custom_call.1} parent=5 // pred_fallthru
        _
      %p194 = scmp.lt.s32.totalorder %s14, 2
      // Predicated region
      $region21: #{tpu_custom_call.1} parent=5 // pred_check
        %p195 = pneg %p194
      $region22: #{tpu_custom_call.1} parent=5 // pred_check_branch
        %197 = sbr.rel (%p195) target = $region24
      $region23: #{tpu_custom_call.1} parent=5 // pred_region
        // Predicated region
        $region25: #{tpu_custom_call.1} parent=23 // pred_check
          %p198 = pneg %p46
        $region26: #{tpu_custom_call.1} parent=23 // pred_check_branch
          %200 = sbr.rel (%p198) target = $region28
        $region27: #{tpu_custom_call.1} parent=23 // pred_region
          %p201 = scmp.lt.s32.totalorder %s22, 1
          %s202 = scalar_select %p201, %s22, 1
          %s203 = smul.addr %s202, 2
          %s204 = smul.addr %s203, 4
          %s205 = scalar_lea.vmem %s0, %s204
        $region28: #{tpu_custom_call.1} parent=23 // pred_fallthru
          _
        // Predicated region
        $region29: #{tpu_custom_call.1} parent=23 // pred_check
          %p206 = pneg %p72
        $region30: #{tpu_custom_call.1} parent=23 // pred_check_branch
          %208 = sbr.rel (%p206) target = $region32
        $region31: #{tpu_custom_call.1} parent=23 // pred_region
          %p209 = scmp.lt.s32.totalorder %s22, 1
          %s210 = scalar_select %p209, %s22, 1
          %s211 = smul.addr %s210, 2
          %s212 = smul.addr %s211, 8
          %s213 = scalar_lea.vmem %s1, %s212
        $region32: #{tpu_custom_call.1} parent=23 // pred_fallthru
          _
      $region24: #{tpu_custom_call.1} parent=5 // pred_fallthru
        _
      %p214 = scmp.le.s32.totalorder 1, %s14
      %p215 = scmp.lt.s32.totalorder %s14, 3
      %p216 = pnand %p214, %p215
      %p217 = pneg %p216
      // Predicated region
      $region33: #{tpu_custom_call.1} parent=5 // pred_check
        _
      $region34: #{tpu_custom_call.1} parent=5 // pred_check_branch
        %219 = sbr.rel (%p216) target = $region36
      $region35: #{tpu_custom_call.1} parent=5 // pred_region
        %s220 = ssub.s32 %s14, 1
        // Predicated region
        $region37: #{tpu_custom_call.1} parent=35 // pred_check
          %p221 = pneg %p104
        $region38: #{tpu_custom_call.1} parent=35 // pred_check_branch
          %223 = sbr.rel (%p221) target = $region40
        $region39: #{tpu_custom_call.1} parent=35 // pred_region
          %224 = dma.done [#allocation3], 1024
        $region40: #{tpu_custom_call.1} parent=35 // pred_fallthru
          _
        %p225 = scmp.lt.s32.totalorder %s24, 1
        %s226 = scalar_select %p225, %s24, 1
        %s227 = smul.addr %s226, 2
        %s228 = smul.addr %s227, 4
        %s229 = scalar_lea.vmem %s0, %s228
        %p230 = pneg %p52
        %p231 = pneg %p49
        %p232 = scmp.lt.s32.totalorder %s24, 1
        %s233 = scalar_select %p232, %s24, 1
        %s234 = smul.addr %s233, 2
        %s235 = smul.addr %s234, 8
        %s236 = scalar_lea.vmem %s1, %s235
        %p237 = pneg %p78
        %p238 = pneg %p75
        %p239 = pneg %p104
        %p240 = pneg %p101
        %p241 = scmp.lt.s32.totalorder %s23, 0
        %s242 = scalar_select %p241, %s23, 0
        %s243 = scalar_lea.vmem %s3, %s242
        %p244 = pneg %p130
        %p245 = pneg %p127
        %p246 = pneg %p158
        %p247 = pneg %p155
        %s248 = sand.u32 %s145, 1
        %s249 = scalar_lea.sflag [#allocation4], %s248
        %s250 = sand.u32 %s145, 1
        %s251 = scalar_lea.vmem [#allocation5], %s250
        %p252 = scmp.lt.s32.totalorder %s24, 1
        %s253 = scalar_select %p252, %s24, 1
        %s254 = smul.addr %s253, 2
        %s255 = smul.addr %s254, 4
        %s256 = scalar_lea.vmem %s0, %s255
        %p257 = scmp.lt.s32.totalorder %s24, 1
        %s258 = scalar_select %p257, %s24, 1
        %s259 = smul.addr %s258, 2
        %s260 = smul.addr %s259, 8
        %s261 = scalar_lea.vmem %s1, %s260
        %p262 = scmp.lt.s32.totalorder %s23, 0
        %s263 = scalar_select %p262, %s23, 0
        %s264 = scalar_lea.vmem %s3, %s263
        %v266 = vld [vmem:[%s256] sm:$0xf]
        %v267 = vld [vmem:[%s256 + $0x4] sm:$0xf]
        %v268 = vld [vmem:[#allocation2] sm:$0xf]
        %v269 = vld [vmem:[#allocation2 + $0x4] sm:$0xf]
        %v270 = vld [vmem:[#allocation2 + $0x8] sm:$0xf]
        %v271 = vld [vmem:[#allocation2 + $0xc] sm:$0xf]
        %v272 = vld [vmem:[#allocation2 + $0x10] sm:$0xf]
        %v273 = vld [vmem:[#allocation2 + $0x14] sm:$0xf]
        %v274 = vld [vmem:[#allocation2 + $0x18] sm:$0xf]
        %v275 = vld [vmem:[#allocation2 + $0x1c] sm:$0xf]
        %v276 = vld [vmem:[#allocation2 + $0x20] sm:$0xf]
        %v277 = vld [vmem:[#allocation2 + $0x24] sm:$0xf]
        %v278 = vld [vmem:[#allocation2 + $0x28] sm:$0xf]
        %v279 = vld [vmem:[#allocation2 + $0x2c] sm:$0xf]
        %v280 = vld [vmem:[#allocation2 + $0x30] sm:$0xf]
        %v281 = vld [vmem:[#allocation2 + $0x34] sm:$0xf]
        %v282 = vld [vmem:[#allocation2 + $0x38] sm:$0xf]
        %v283 = vld [vmem:[#allocation2 + $0x3c] sm:$0xf]
        %v286 = vunpack.c.l.b16 %v266
        %v287 = vunpack.c.l.b16 %v267
        %v288 = vpack.c.b16 %v287, %v286
        %v306 = vunpack.c.l.b16 %v268
        %v307 = vunpack.c.l.b16 %v269
        %v308 = vunpack.c.l.b16 %v270
        %v309 = vunpack.c.l.b16 %v271
        %v310 = vunpack.c.l.b16 %v272
        %v311 = vunpack.c.l.b16 %v273
        %v312 = vunpack.c.l.b16 %v274
        %v313 = vunpack.c.l.b16 %v275
        %v314 = vunpack.c.l.b16 %v276
        %v315 = vunpack.c.l.b16 %v277
        %v316 = vunpack.c.l.b16 %v278
        %v317 = vunpack.c.l.b16 %v279
        %v318 = vunpack.c.l.b16 %v280
        %v319 = vunpack.c.l.b16 %v281
        %v320 = vunpack.c.l.b16 %v282
        %v321 = vunpack.c.l.b16 %v283
        %v322 = vpack.c.b16 %v307, %v306
        %v323 = vpack.c.b16 %v309, %v308
        %v324 = vpack.c.b16 %v311, %v310
        %v325 = vpack.c.b16 %v313, %v312
        %v326 = vpack.c.b16 %v315, %v314
        %v327 = vpack.c.b16 %v317, %v316
        %v328 = vpack.c.b16 %v319, %v318
        %v329 = vpack.c.b16 %v321, %v320
        %338 = vmatprep.subr.bf16.mxu0 0
        %339 = vmatpush1.bf16.msra.mxu0 %v322
        %340 = vmatprep.subr.bf16.mxu0 0
        %341 = vmatpush1.bf16.msra.mxu0 %v323
        %342 = vmatprep.subr.bf16.mxu0 0
        %343 = vmatpush1.bf16.msra.mxu0 %v324
        %344 = vmatprep.subr.bf16.mxu0 0
        %345 = vmatpush1.bf16.msra.mxu0 %v325
        %346 = vmatprep.subr.bf16.mxu0 0
        %347 = vmatpush1.bf16.msra.mxu0 %v326
        %348 = vmatprep.subr.bf16.mxu0 0
        %349 = vmatpush1.bf16.msra.mxu0 %v327
        %350 = vmatprep.subr.bf16.mxu0 0
        %351 = vmatpush1.bf16.msra.mxu0 %v328
        %352 = vmatprep.subr.bf16.mxu0 0
        %353 = vmatpush1.bf16.msra.mxu0 %v329
        %354 = vmatprep.subr.bf16.mxu0 0
        %355 = vmatpush1.bf16.msra.mxu0 0
        %356 = vmatprep.subr.bf16.mxu0 0
        %357 = vmatpush1.bf16.msra.mxu0 0
        %358 = vmatprep.subr.bf16.mxu0 0
        %359 = vmatpush1.bf16.msra.mxu0 0
        %360 = vmatprep.subr.bf16.mxu0 0
        %361 = vmatpush1.bf16.msra.mxu0 0
        %362 = vmatprep.subr.bf16.mxu0 0
        %363 = vmatpush1.bf16.msra.mxu0 0
        %364 = vmatprep.subr.bf16.mxu0 0
        %365 = vmatpush1.bf16.msra.mxu0 0
        %366 = vmatprep.subr.bf16.mxu0 0
        %367 = vmatpush1.bf16.msra.mxu0 0
        %368 = vmatprep.subr.bf16.mxu0 0
        %369 = vmatpush1.bf16.msra.mxu0 0
        %370 = vmatprep.mubr.bf16.mxu0 0
        %371 = vmatmul.mubr.bf16.gmra.mrb[0].mxu0 %v288
        %v372 = vpop.f32.mrb[0].mxu0
        %v373 = vadd.f32 0.0, %v372
        %v374 = vpop.f32.mrb[0].mxu0
        %v375 = vpop.f32.mrb[0].mxu0
        %v376 = vadd.f32 0.0, %v375
        %v377 = vpop.f32.mrb[0].mxu0
        %378 = vdwg.mxu0
        %v379 = vld [vmem:[%s261] sm:$0xff]
        %v380 = vld [vmem:[%s261 + $0x8] sm:$0xff]
        %vm381 = vcmp.eq.f32.partialorder %v379, 0.0
        %vm382 = vcmp.eq.f32.partialorder %v380, 0.0
        %v383 = vsel %vm381, 1, 0
        %v384 = vsel %vm382, 1, 0
        %385 = vset.pattern.permute.xlu0 0
        %386 = vperm.xlu0 %385, %v383
        %v387 = vpop.permute.xlu0 %386
        %388 = vset.pattern.permute.xlu0 0
        %389 = vperm.xlu0 %388, %v384
        %v390 = vpop.permute.xlu0 %389
        %vm391 = vcmp.eq.s32.totalorder %v387, 1
        %vm392 = vcmp.eq.s32.totalorder %v390, 1
        %394 = vset.pattern.permute.xlu0 0
        %395 = vperm.xlu0 %394, %v379
        %v396 = vpop.permute.xlu0 %395
        %399 = vset.pattern.permute.xlu0 0
        %400 = vperm.xlu0 %399, %v380
        %v401 = vpop.permute.xlu0 %400
        %v403 = vsel %vm391, %v373, %v396
        %v404 = vsel %vm392, %v376, %v401
        %v405 = vmax.f32 %v403, %v404
        %v406 = vrot.slane %v405, 4
        %v407 = vmax.f32 %v405, %v406
        %v408 = vrot.slane %v407, 2
        %v409 = vmax.f32 %v407, %v408
        %v410 = vrot.slane %v409, 1
        %v411 = vmax.f32 %v409, %v410
        %v412 = vld [vmem:[%s264] sm:$0x1]
        %vm413 = vcmp.gt.f32.partialorder %v412, 0.0
        %v414 = vsel %vm413, %v411, -1.0
        %415 = vst [vmem:[%s251] sm:$0x1] %v414
        %s416 = sand.u32 %s145, 1
        %s417 = scalar_lea.sflag [#allocation4], %s416
        %s418 = sand.u32 %s145, 1
        %s419 = scalar_lea.vmem [#allocation5], %s418
        // Predicated region
        $region41: #{tpu_custom_call.1} parent=35 // pred_check
          %p420 = pneg %p155
        $region42: #{tpu_custom_call.1} parent=35 // pred_check_branch
          %422 = sbr.rel (%p420) target = $region44
        $region43: #{tpu_custom_call.1} parent=35 // pred_region
          %s424 = ssub.s32 16, 16
          %425 = vsyncadd %s417, %s424
          %s426 = sadd.s32 %s23, %s24
          %s427 = smul.addr %s426, 16
          %s428 = scalar_lea.hbm %s4, %s427
          %s430 = sshll.u32 %s419, 4
          %s431 = int_to_ptr.vmem [resolvable:$true] %s430
          %433 = dma.vmem_to_hbm [thread:$0]  %s431, 16, %s428, %s417
        $region44: #{tpu_custom_call.1} parent=35 // pred_fallthru
          _
      $region36: #{tpu_custom_call.1} parent=5 // pred_fallthru
        _
      %p434 = scmp.le.s32.totalorder 2, %s14
      // Predicated region
      $region45: #{tpu_custom_call.1} parent=5 // pred_check
        %p435 = pneg %p434
      $region46: #{tpu_custom_call.1} parent=5 // pred_check_branch
        %437 = sbr.rel (%p435) target = $region48
      $region47: #{tpu_custom_call.1} parent=5 // pred_region
        %s438 = ssub.s32 %s14, 2
        // Predicated region
        $region49: #{tpu_custom_call.1} parent=47 // pred_check
          %p439 = pneg %p161
        $region50: #{tpu_custom_call.1} parent=47 // pred_check_branch
          %441 = sbr.rel (%p439) target = $region52
        $region51: #{tpu_custom_call.1} parent=47 // pred_region
          %s442 = sand.u32 %s146, 1
          %s443 = scalar_lea.sflag [#allocation4], %s442
          %s444 = sand.u32 %s146, 1
          %s445 = scalar_lea.vmem [#allocation5], %s444
          %446 = dma.done %s443, 16
        $region52: #{tpu_custom_call.1} parent=47 // pred_fallthru
          _
      $region48: #{tpu_custom_call.1} parent=5 // pred_fallthru
        _
    $region6: #{tpu_custom_call.1} parent=1 // loop_footer
      %s18 = sadd.s32 1, %s14
    $region7: #{tpu_custom_call.1} parent=1 // loop_footer_branch
      %13 = sbr.rel target = $region3
    $region8: #{tpu_custom_call.1} parent=1 // loop_exit
      _
    %447 = vsyncpa [#allocation3], 1
    %s448 = scalar_lea.sflag [#allocation3], 1
    %449 = vsyncpa %s448, 1
    %450 = vsyncpa [#allocation4], 1
    %s451 = scalar_lea.sflag [#allocation4], 1
    %452 = vsyncpa %s451, 1

</llo_original>
